<compile_context>
chip_gen: v6e
topology: v6e:2x2x1
jax: 0.10.0
libtpu: 0.0.40
codegen_flags: <defaults>
</compile_context>

<pallas_src>
import math
import functools

import numpy as np
import jax
import jax.numpy as jnp
from jax.experimental import pallas as pl
from jax.experimental.pallas import tpu as pltpu


def _round_up(x, m):
    return (x + m - 1) // m * m


@functools.lru_cache(maxsize=None)
def _vmem_limit_bytes():
    """Generation-aware scoped-VMEM limit (~100 MiB on v5e/v6e, ~52 MiB on v7x)."""
    cap = 64 * 1024 * 1024
    try:
        info = pltpu.get_tpu_info()
        cap = int(getattr(info, "vmem_capacity_bytes", cap))
    except Exception:
        pass
    return max(32 * 1024 * 1024, min(int(cap * 4 // 5), 100 * 1024 * 1024))


# ----------------------------------------------------------------------------
# Generic Linear (x @ W + b) Pallas kernel, row-tiled.
# ----------------------------------------------------------------------------
def _linear_kernel(x_ref, w_ref, b_ref, o_ref):
    o_ref[...] = (
        jnp.dot(x_ref[...], w_ref[...], preferred_element_type=jnp.float32)
        + b_ref[...]
    ).astype(o_ref.dtype)


def linear(x2d, w, b, *, tm=256, out_dtype=jnp.float32):
    """x2d: (N, D), w: (D, E), b: (E,) -> (N, E).  Row-tiled matmul kernel."""
    N, D = x2d.shape
    E = w.shape[1]
    tm = min(tm, _round_up(N, 8))          # small problems -> single (8-aligned) tile
    n_pad = _round_up(N, tm)
    if n_pad != N:
        x2d = jnp.pad(x2d, ((0, n_pad - N), (0, 0)))
    # TODO(synk): add a K grid axis + f32 accumulator scratch if d_model grows large.
    out = pl.pallas_call(
        _linear_kernel,
        grid=(n_pad // tm,),
        out_shape=jax.ShapeDtypeStruct((n_pad, E), out_dtype),
        in_specs=[
            pl.BlockSpec((tm, D), lambda i: (i, 0)),
            pl.BlockSpec((D, E), lambda i: (0, 0)),
            pl.BlockSpec((1, E), lambda i: (0, 0)),
        ],
        out_specs=pl.BlockSpec((tm, E), lambda i: (i, 0)),
        compiler_params=pltpu.CompilerParams(
            dimension_semantics=("parallel",),
            vmem_limit_bytes=_vmem_limit_bytes()),
    )(x2d, w, b.reshape(1, E))
    return out[:N]


# ----------------------------------------------------------------------------
# Core multi-scale deformable attention kernel
#   softmax + fused sampling-location math + per-level bilinear one-hot weights
#   + single K=S matmul per head.
#
# Per grid step (one batch element, one Q-tile):
#   value_ref : (S_pad, Dv)   bf16, lane-dense, resident across the q grid axis
#   proj_ref  : (Qt, 3*H*L*P) f32  [off_x | off_y | attn logits], query-major
#   ref_ref   : (Qt, 2*L)     f32  [ref_x per level | ref_y per level]
#   out_ref   : (Qt, Dv)      f32  head-major channel order (matches torch reference)
#   wmat_ref  : (Qt, S_pad)   bf16 scratch holding one head's bilinear weight matrix
# ----------------------------------------------------------------------------
def _msda_kernel(value_ref, proj_ref, ref_ref, out_ref, wmat_ref, *,
                 n_heads, n_levels, n_points, head_dim,
                 spatial_shapes, level_pad_starts, level_pad_sizes):
    H, L, P, Dh = n_heads, n_levels, n_points, head_dim
    LP = L * P
    HLP = H * LP
    Qt = proj_ref.shape[0]

    proj = proj_ref[...]                      # (Qt, 3*HLP)
    offx_all = proj[:, 0:HLP]
    offy_all = proj[:, HLP:2 * HLP]
    logits_all = proj[:, 2 * HLP:3 * HLP]
    ref_all = ref_ref[...]                    # (Qt, 2*L)

    for h in range(H):                        # static unrolled head loop
        c0 = h * LP

        # softmax over this head's L*P logits (matches F.softmax over levels*points)
        lg = logits_all[:, c0:c0 + LP]
        m = jnp.max(lg, axis=-1, keepdims=True)
        e = jnp.exp(lg - m)
        attn = e * pl.reciprocal(jnp.sum(e, axis=-1, keepdims=True), approx=True)

        for l in range(L):                    # per-level: compare only against S_l lanes
            Hl, Wl = spatial_shapes[l]
            s0 = level_pad_starts[l]
            Slp = level_pad_sizes[l]
            cc0 = c0 + l * P

            offx = offx_all[:, cc0:cc0 + P]   # (Qt, P)
            offy = offy_all[:, cc0:cc0 + P]
            a_lp = attn[:, l * P:(l + 1) * P]
            rx = ref_all[:, l:l + 1]          # (Qt, 1)
            ry = ref_all[:, L + l:L + l + 1]

            # sampling location fused with offset normalizer, then
            # grid_sample(align_corners=False): pixel = loc * size - 0.5
            x = (rx + offx * (1.0 / Wl)) * Wl - 0.5
            y = (ry + offy * (1.0 / Hl)) * Hl - 0.5
            x0f = jnp.floor(x)
            y0f = jnp.floor(y)
            dx = x - x0f
            dy = y - y0f
            x0 = x0f.astype(jnp.int32)
            y0 = y0f.astype(jnp.int32)
            x1 = x0 + 1
            y1 = y0 + 1

            def corner(xi, yi, w):
                # zero padding: OOB corners -> sentinel index -1 (never matches), weight 0
                valid = (xi >= 0) & (xi < Wl) & (yi >= 0) & (yi < Hl)
                lidx = jnp.where(valid, yi * Wl + xi, -1)
                wgt = jnp.where(valid, w * a_lp, 0.0)
                return lidx, wgt

            corners = [corner(x0, y0, (1.0 - dx) * (1.0 - dy)),
                       corner(x1, y0, dx * (1.0 - dy)),
                       corner(x0, y1, (1.0 - dx) * dy),
                       corner(x1, y1, dx * dy)]

            # Column-streamed one-hot accumulation: only (Qt, S_l_pad) values live at once,
            # no 3-D intermediates, no cross-sublane reduce.
            iota = jax.lax.broadcasted_iota(jnp.int32, (1, Slp), 1)
            acc = jnp.zeros((Qt, Slp), jnp.float32)
            for lidx, wgt in corners:
                for p in range(P):
                    acc = acc + jnp.where(lidx[:, p:p + 1] == iota,
                                          wgt[:, p:p + 1], 0.0)
            # lane-aligned static slice (levels padded to multiples of 128)
            wmat_ref[:, s0:s0 + Slp] = acc.astype(wmat_ref.dtype)

        # one K=S matmul per head (bf16 operands, f32 accumulate); direct slice store
        out_ref[:, h * Dh:(h + 1) * Dh] = jnp.dot(
            wmat_ref[...], value_ref[:, h * Dh:(h + 1) * Dh],
            preferred_element_type=jnp.float32).astype(out_ref.dtype)


# ----------------------------------------------------------------------------
# Full forward (AdapterMultiscaleDeformableAttention.forward)
# ----------------------------------------------------------------------------
def adapter_msda_forward(params, query, reference_points, input_flatten,
                         spatial_shapes, level_start_index,
                         *, n_heads, n_levels, n_points, ratio=1.0):
    B, Q, D = query.shape
    _, S, _ = input_flatten.shape
    H, L, P = n_heads, n_levels, n_points
    LP = L * P
    HLP = H * LP
    Dv = int(D * ratio)
    assert Dv % H == 0, "int(d_model * ratio) must be divisible by n_heads"
    Dh = Dv // H
    spatial_shapes = [(int(hh), int(ww)) for (hh, ww) in spatial_shapes]
    assert len(spatial_shapes) == L
    assert sum(hh * ww for hh, ww in spatial_shapes) == S
    assert reference_points.shape[-1] == 2
    # TODO(synk): reference_points with last dim == 4 (box-refinement branch) not implemented.
    # TODO(synk): input_padding_mask is ignored; the adapter module never forwards it as
    #             `attention_mask`, so this matches the reference semantics.
    del level_start_index  # padded per-level starts are recomputed below (static)

    vmem_limit = _vmem_limit_bytes()

    # ---- value projection straight to bf16 (halves DMA/VMEM of the resident tile) ----
    value = linear(input_flatten.reshape(B * S, D), params["value_w"],
                   params["value_b"], out_dtype=jnp.bfloat16).reshape(B, S, Dv)

    # ---- fused sampling-offset + attention-logit projection, x/y de-interleaved ----
    off_w = params["off_w"].reshape(D, HLP, 2)
    off_b = params["off_b"].reshape(HLP, 2)
    fused_w = jnp.concatenate([off_w[..., 0], off_w[..., 1], params["attn_w"]], axis=1)
    fused_b = jnp.concatenate([off_b[:, 0], off_b[:, 1], params["attn_b"]], axis=0)
    proj = linear(query.reshape(B * Q, D), fused_w, fused_b).reshape(B, Q, 3 * HLP)

    # reference points as (B, Q, 2L): [x per level | y per level]
    ref_xy = jnp.concatenate([reference_points[..., 0], reference_points[..., 1]],
                             axis=-1)

    # ---- pad each level's flattened length to a lane multiple (128) ----
    s_l = [hh * ww for (hh, ww) in spatial_shapes]
    s_lp = [_round_up(s, 128) for s in s_l]
    pad_starts = [0]
    for sp in s_lp[:-1]:
        pad_starts.append(pad_starts[-1] + sp)
    S_pad = sum(s_lp)
    if S_pad == S:
        value_pad = value
    else:
        segs, start = [], 0
        for s, sp in zip(s_l, s_lp):
            seg = value[:, start:start + s, :]
            if sp != s:
                seg = jnp.pad(seg, ((0, 0), (0, sp - s), (0, 0)))
            segs.append(seg)
            start += s
        value_pad = jnp.concatenate(segs, axis=1)            # (B, S_pad, Dv), bf16

    # ---- Q tiling (pad Q to a multiple of the tile) ----
    Qt = min(128, _round_up(Q, 8))
    q_pad = _round_up(Q, Qt)
    if q_pad != Q:
        pad = ((0, 0), (0, q_pad - Q), (0, 0))
        proj = jnp.pad(proj, pad)
        ref_xy = jnp.pad(ref_xy, pad)
    nqt = q_pad // Qt

    kernel = functools.partial(
        _msda_kernel, n_heads=H, n_levels=L, n_points=P, head_dim=Dh,
        spatial_shapes=tuple(spatial_shapes),
        level_pad_starts=tuple(pad_starts),
        level_pad_sizes=tuple(s_lp))

    # value block index depends only on the outer b axis -> tile stays VMEM-resident across q.
    value_idx = lambda b, q: (b, 0, 0)
    value_tile_bytes = S_pad * Dv * 2                         # bf16
    if 2 * value_tile_bytes > vmem_limit // 3:
        # v7x-style VMEM pressure: single-buffer the resident value tile.
        try:
            value_spec = pl.BlockSpec((None, S_pad, Dv), value_idx,
                                      pipeline_mode=pl.Buffered(1))
        except TypeError:
            value_spec = pl.BlockSpec((None, S_pad, Dv), value_idx)
    else:
        value_spec = pl.BlockSpec((None, S_pad, Dv), value_idx)

    out = pl.pallas_call(
        kernel,
        grid_spec=pltpu.PrefetchScalarGridSpec(
            num_scalar_prefetch=0,
            grid=(B, nqt),                                    # q innermost: value not re-DMA'd
            in_specs=[
                value_spec,
                pl.BlockSpec((None, Qt, 3 * HLP), lambda b, q: (b, q, 0)),
                pl.BlockSpec((None, Qt, 2 * L), lambda b, q: (b, q, 0)),
            ],
            out_specs=pl.BlockSpec((None, Qt, Dv), lambda b, q: (b, q, 0)),
            scratch_shapes=[pltpu.VMEM((Qt, S_pad), jnp.bfloat16)],
        ),
        out_shape=jax.ShapeDtypeStruct((B, q_pad, Dv), jnp.float32),
        compiler_params=pltpu.CompilerParams(
            dimension_semantics=("parallel", "parallel"),
            vmem_limit_bytes=vmem_limit),
    )(value_pad, proj, ref_xy)

    out = out[:, :Q, :]                                       # drop Q padding

    # ---- output projection ----
    return linear(out.reshape(B * Q, Dv), params["out_w"],
                  params["out_b"]).reshape(B, Q, D)


# ----------------------------------------------------------------------------
# Deterministic parameter init (mirrors _reset_parameters)
# ----------------------------------------------------------------------------
def init_params(key, d_model, n_heads, n_levels, n_points, ratio=1.0):
    Dv = int(d_model * ratio)
    k1, k2 = jax.random.split(key)

    def xavier(k, fan_in, fan_out):
        bound = math.sqrt(6.0 / (fan_in + fan_out))
        return jax.random.uniform(k, (fan_in, fan_out), jnp.float32, -bound, bound)

    # sampling_offsets: weight = 0, bias = directional grid init
    thetas = jnp.arange(n_heads, dtype=jnp.float32) * (2.0 * math.pi / n_heads)
    grid = jnp.stack([jnp.cos(thetas), jnp.sin(thetas)], axis=-1)            # (H, 2)
    grid = grid / jnp.max(jnp.abs(grid), axis=-1, keepdims=True)
    grid = jnp.tile(grid.reshape(n_heads, 1, 1, 2), (1, n_levels, n_points, 1))
    scale = jnp.arange(1, n_points + 1, dtype=jnp.float32).reshape(1, 1, n_points, 1)
    off_b = (grid * scale).reshape(-1)

    return dict(
        off_w=jnp.zeros((d_model, n_heads * n_levels * n_points * 2), jnp.float32),
        off_b=off_b,
        attn_w=jnp.zeros((d_model, n_heads * n_levels * n_points), jnp.float32),
        attn_b=jnp.zeros((n_heads * n_levels * n_points,), jnp.float32),
        value_w=xavier(k1, d_model, Dv),
        value_b=jnp.zeros((Dv,), jnp.float32),
        out_w=xavier(k2, Dv, d_model),
        out_b=jnp.zeros((d_model,), jnp.float32),
    )


if __name__ == "__main__":
    # small, shape-consistent config
    d_model, n_levels, n_heads, n_points, ratio = 32, 4, 8, 4, 1.0
    B, Q = 2, 16
    spatial_shapes = [(8, 8), (4, 4), (2, 2), (2, 2)]        # static per-level (H, W)
    level_start_index = [0]
    for (h, w) in spatial_shapes[:-1]:
        level_start_index.append(level_start_index[-1] + h * w)
    S = sum(h * w for h, w in spatial_shapes)                # 88

    key = jax.random.PRNGKey(0)
    kp, kq, kf, kr = jax.random.split(key, 4)
    params = init_params(kp, d_model, n_heads, n_levels, n_points, ratio)
    query = jax.random.normal(kq, (B, Q, d_model), jnp.float32)
    input_flatten = jax.random.normal(kf, (B, S, d_model), jnp.float32)
    reference_points = jax.random.uniform(kr, (B, Q, n_levels, 2), jnp.float32)

    out = adapter_msda_forward(params, query, reference_points, input_flatten,
                               spatial_shapes, level_start_index,
                               n_heads=n_heads, n_levels=n_levels,
                               n_points=n_points, ratio=ratio)
    jax.block_until_ready(out)
    assert out.shape == (B, Q, d_model) and out.dtype == jnp.float32
    assert bool(jnp.all(jnp.isfinite(out)))
    print("KERNEL_OK")
</pallas_src>

<mosaic_0001>
module attributes {stable_mosaic.version = 11 : i64} {
  func.func @_linear_kernel(%arg0: i32, %arg1: memref<176x32xf32, #tpu.memory_space<vmem>>, %arg2: memref<32x32xf32, #tpu.memory_space<vmem>>, %arg3: memref<1x32xf32, #tpu.memory_space<vmem>>, %arg4: memref<176x32xbf16, #tpu.memory_space<vmem>>) attributes {dimension_semantics = [#tpu.dimension_semantics<parallel>], iteration_bounds = array<i64: 1>, scalar_prefetch = 0 : i64, scratch_operands = 0 : i64, tpu.core_type = #tpu.core_type<tc>, window_params = [{transform_indices = @transform_0, window_bounds = array<i64: 176, 32>}, {pipeline_mode = #tpu.pipeline_mode<synchronous>, transform_indices = @transform_1, window_bounds = array<i64: 32, 32>}, {pipeline_mode = #tpu.pipeline_mode<synchronous>, transform_indices = @transform_2, window_bounds = array<i64: 1, 32>}, {transform_indices = @transform_3, window_bounds = array<i64: 176, 32>}]} {
    %c0 = arith.constant 0 : index
    %c0_0 = arith.constant 0 : index
    %0 = vector.load %arg1[%c0, %c0_0] : memref<176x32xf32, #tpu.memory_space<vmem>>, vector<176x32xf32>
    %c0_1 = arith.constant 0 : index
    %c0_2 = arith.constant 0 : index
    %1 = vector.load %arg2[%c0_1, %c0_2] : memref<32x32xf32, #tpu.memory_space<vmem>>, vector<32x32xf32>
    %cst = arith.constant dense<0.000000e+00> : vector<176x32xf32>
    %2 = tpu.matmul %0, %1, %cst {dimension_numbers = #tpu.dot_dimension_numbers<[1], [0], [0], [1], [0, 0, 1, 1], [], []>} : vector<176x32xf32>, vector<32x32xf32>, vector<176x32xf32> -> vector<176x32xf32>
    %c0_3 = arith.constant 0 : index
    %c0_4 = arith.constant 0 : index
    %3 = vector.load %arg3[%c0_3, %c0_4] : memref<1x32xf32, #tpu.memory_space<vmem>>, vector<1x32xf32>
    %4 = vector.broadcast %3 : vector<1x32xf32> to vector<176x32xf32>
    %5 = arith.addf %2, %4 : vector<176x32xf32>
    %6 = arith.truncf %5 : vector<176x32xf32> to vector<176x32xbf16>
    %c0_5 = arith.constant 0 : index
    %c0_6 = arith.constant 0 : index
    %7 = vector.load %arg4[%c0_5, %c0_6] : memref<176x32xbf16, #tpu.memory_space<vmem>>, vector<176x32xbf16>
    tpu.vector_store %arg4[%c0_5, %c0_6], %6 {strides = array<i32>} : memref<176x32xbf16, #tpu.memory_space<vmem>>, vector<176x32xbf16>,
    return
  }
  func.func @transform_0(%arg0: i32) -> (i32, i32) {
    %c0_i32 = arith.constant 0 : i32
    %c0_i32_0 = arith.constant 0 : i32
    return %arg0, %c0_i32 : i32, i32
  }
  func.func @transform_1(%arg0: i32) -> (i32, i32) {
    %c0_i32 = arith.constant 0 : i32
    %c0_i32_0 = arith.constant 0 : i32
    %c0_i32_1 = arith.constant 0 : i32
    return %c0_i32, %c0_i32_0 : i32, i32
  }
  func.func @transform_2(%arg0: i32) -> (i32, i32) {
    %c0_i32 = arith.constant 0 : i32
    %c0_i32_0 = arith.constant 0 : i32
    %c0_i32_1 = arith.constant 0 : i32
    return %c0_i32, %c0_i32_0 : i32, i32
  }
  func.func @transform_3(%arg0: i32) -> (i32, i32) {
    %c0_i32 = arith.constant 0 : i32
    %c0_i32_0 = arith.constant 0 : i32
    return %arg0, %c0_i32 : i32, i32
  }
}

</mosaic_0001>

<llo_original>
// kernel: tpu_custom_call.1
$region0: #{tpu_custom_call.1}
  #allocation0 [shape = 'u32[]', space=smem, size = 0x4, offset = 0x4, fixed_abs, tag = 'smem constant byte address 0x4 - core index']
  #allocation1 [shape = 'u32[144,128]{1,0:T(1,128)}', space=vmem, size = 0x12000, scoped, tag = 'internal scratch']
  %s0 = inlined_call_operand.vmem [shape: f32[176,32], index: 0, kind: input, shape index: {}]
  %s1 = inlined_call_operand.vmem [shape: f32[32,32], index: 1, kind: input, shape index: {}]
  %s2 = inlined_call_operand.vmem [shape: f32[1,32], index: 2, kind: input, shape index: {}]
  %s3 = inlined_call_operand.vmem [shape: bf16[176,32], index: 3, kind: output, shape index: {}]
  %s4 = sld [smem:[#allocation0]]
  $region22: #{tpu_custom_call.1} parent=0
    _
  %s6 = ssub.s32 1, %s4
  %s7 = scalar_select 0, %s6, %s4
  // Predicated region
  $region2: #{tpu_custom_call.1} parent=0 // pred_check
    _
  $region3: #{tpu_custom_call.1} parent=0 // pred_check_branch
    %9 = sbr.rel (0) target = $region5
  $region4: #{tpu_custom_call.1} parent=0 // pred_region
    _
  $region5: #{tpu_custom_call.1} parent=0 // pred_fallthru
    _
  // Predicated region
  $region6: #{tpu_custom_call.1} parent=0 // pred_check
    _
  $region7: #{tpu_custom_call.1} parent=0 // pred_check_branch
    %11 = sbr.rel (0) target = $region9
  $region8: #{tpu_custom_call.1} parent=0 // pred_region
    _
  $region9: #{tpu_custom_call.1} parent=0 // pred_fallthru
    _
  // Predicated region
  $region10: #{tpu_custom_call.1} parent=0 // pred_check
    _
  $region11: #{tpu_custom_call.1} parent=0 // pred_check_branch
    %13 = sbr.rel (0) target = $region13
  $region12: #{tpu_custom_call.1} parent=0 // pred_region
    _
  $region13: #{tpu_custom_call.1} parent=0 // pred_fallthru
    _
  %v14 = vld [vmem:[%s0] sm:$0xff]
  %v15 = vld [vmem:[%s0 + $0x8] sm:$0xff]
  %v16 = vld [vmem:[%s0 + $0x10] sm:$0xff]
  %v17 = vld [vmem:[%s0 + $0x18] sm:$0xff]
  %v18 = vld [vmem:[%s0 + $0x20] sm:$0xff]
  %v19 = vld [vmem:[%s0 + $0x28] sm:$0xff]
  %v20 = vld [vmem:[%s0 + $0x30] sm:$0xff]
  %v21 = vld [vmem:[%s0 + $0x38] sm:$0xff]
  %v22 = vld [vmem:[%s0 + $0x40] sm:$0xff]
  %v23 = vld [vmem:[%s0 + $0x48] sm:$0xff]
  %v24 = vld [vmem:[%s0 + $0x50] sm:$0xff]
  %v25 = vld [vmem:[%s0 + $0x58] sm:$0xff]
  %v26 = vld [vmem:[%s0 + $0x60] sm:$0xff]
  %v27 = vld [vmem:[%s0 + $0x68] sm:$0xff]
  %v28 = vld [vmem:[%s0 + $0x70] sm:$0xff]
  %v29 = vld [vmem:[%s0 + $0x78] sm:$0xff]
  %v30 = vld [vmem:[%s0 + $0x80] sm:$0xff]
  %v31 = vld [vmem:[%s0 + $0x88] sm:$0xff]
  %v32 = vld [vmem:[%s0 + $0x90] sm:$0xff]
  %v33 = vld [vmem:[%s0 + $0x98] sm:$0xff]
  %v34 = vld [vmem:[%s0 + $0xa0] sm:$0xff]
  %v35 = vld [vmem:[%s0 + $0xa8] sm:$0xff]
  %v36 = vld [vmem:[%s1] sm:$0xff]
  %v37 = vld [vmem:[%s1 + $0x8] sm:$0xff]
  %v38 = vld [vmem:[%s1 + $0x10] sm:$0xff]
  %v39 = vld [vmem:[%s1 + $0x18] sm:$0xff]
  %v40 = vld [vmem:[%s2] sm:$0x1]
  %v42 = vlaneseq
  %v43 = vshrl.u32 %v42, 7
  %v44 = vsub.s32 0, %v43
  %v45 = vrot.slane %v40, %v44
  %vm47 = vcmask 261120
  %v49 = vsel %vm47, %v14, 0
  %v52 = vsel %vm47, %v15, 0
  %v55 = vsel %vm47, %v16, 0
  %v58 = vsel %vm47, %v17, 0
  %v61 = vsel %vm47, %v18, 0
  %v64 = vsel %vm47, %v19, 0
  %v67 = vsel %vm47, %v20, 0
  %v70 = vsel %vm47, %v21, 0
  %v73 = vsel %vm47, %v22, 0
  %v76 = vsel %vm47, %v23, 0
  %v79 = vsel %vm47, %v24, 0
  %v82 = vsel %vm47, %v25, 0
  %v85 = vsel %vm47, %v26, 0
  %v88 = vsel %vm47, %v27, 0
  %v91 = vsel %vm47, %v28, 0
  %v94 = vsel %vm47, %v29, 0
  %v97 = vsel %vm47, %v30, 0
  %v100 = vsel %vm47, %v31, 0
  %v103 = vsel %vm47, %v32, 0
  %v106 = vsel %vm47, %v33, 0
  %v109 = vsel %vm47, %v34, 0
  %v112 = vsel %vm47, %v35, 0
  %114 = vmatprep.subr.mxu0 0.0
  %115 = vmatpush1.msra.mxu0 0.0
  %116 = vmatprep.subr.mxu0 0.0
  %117 = vmatpush1.msra.mxu0 0.0
  %118 = vmatprep.subr.mxu0 0.0
  %119 = vmatpush1.msra.mxu0 0.0
  %120 = vmatprep.subr.mxu0 0.0
  %121 = vmatpush1.msra.mxu0 0.0
  %122 = vmatprep.subr.mxu0 0.0
  %123 = vmatpush1.msra.mxu0 0.0
  %124 = vmatprep.subr.mxu0 0.0
  %125 = vmatpush1.msra.mxu0 0.0
  %126 = vmatprep.subr.mxu0 0.0
  %127 = vmatpush1.msra.mxu0 0.0
  %128 = vmatprep.subr.mxu0 0.0
  %129 = vmatpush1.msra.mxu0 0.0
  %130 = vmatprep.subr.mxu0 0.0
  %131 = vmatpush1.msra.mxu0 0.0
  %132 = vmatprep.subr.mxu0 0.0
  %133 = vmatpush1.msra.mxu0 0.0
  %134 = vmatprep.subr.mxu0 0.0
  %135 = vmatpush1.msra.mxu0 0.0
  %136 = vmatprep.subr.mxu0 0.0
  %137 = vmatpush1.msra.mxu0 0.0
  %138 = vmatprep.subr.mxu0 0.0
  %139 = vmatpush1.msra.mxu0 %v39
  %140 = vmatprep.subr.mxu0 0.0
  %141 = vmatpush1.msra.mxu0 %v38
  %142 = vmatprep.subr.mxu0 0.0
  %143 = vmatpush1.msra.mxu0 %v37
  %144 = vmatprep.subr.mxu0 0.0
  %145 = vmatpush1.msra.mxu0 %v36
  %146 = vmatprep.subr.mxu0 0.0
  %147 = vmatpush2.msra.mxu0 0.0
  %148 = vmatprep.subr.mxu0 0.0
  %149 = vmatpush2.msra.mxu0 0.0
  %150 = vmatprep.subr.mxu0 0.0
  %151 = vmatpush2.msra.mxu0 0.0
  %152 = vmatprep.subr.mxu0 0.0
  %153 = vmatpush2.msra.mxu0 0.0
  %154 = vmatprep.subr.mxu0 0.0
  %155 = vmatpush2.msra.mxu0 0.0
  %156 = vmatprep.subr.mxu0 0.0
  %157 = vmatpush2.msra.mxu0 0.0
  %158 = vmatprep.subr.mxu0 0.0
  %159 = vmatpush2.msra.mxu0 0.0
  %160 = vmatprep.subr.mxu0 0.0
  %161 = vmatpush2.msra.mxu0 0.0
  %162 = vmatprep.subr.mxu0 0.0
  %163 = vmatpush2.msra.mxu0 0.0
  %164 = vmatprep.subr.mxu0 0.0
  %165 = vmatpush2.msra.mxu0 0.0
  %166 = vmatprep.subr.mxu0 0.0
  %167 = vmatpush2.msra.mxu0 0.0
  %168 = vmatprep.subr.mxu0 0.0
  %169 = vmatpush2.msra.mxu0 0.0
  %170 = vmatprep.subr.mxu0 0.0
  %171 = vmatpush2.msra.mxu0 0.0
  %172 = vmatprep.subr.mxu0 0.0
  %173 = vmatpush2.msra.mxu0 0.0
  %174 = vmatprep.subr.mxu0 0.0
  %175 = vmatpush2.msra.mxu0 0.0
  %176 = vmatprep.subr.mxu0 0.0
  %177 = vmatpush2.msra.mxu0 0.0
  %178 = vmatprep.mubr.f32.mxu0 0.0
  %179 = vmatmul.mubr.f32.gmra.mxu0 %v49
  %v180 = vpop.f32.mrf.mxu0
  %v181 = vadd.f32 %v45, %v180
  %v182 = vpop.f32.mrf.mxu0
  %183 = vmatprep.mubr.f32.mxu0 0.0
  %184 = vmatmul.mubr.f32.gmra.mxu0 %v52
  %v185 = vpop.f32.mrf.mxu0
  %v186 = vadd.f32 %v45, %v185
  %v187 = vpop.f32.mrf.mxu0
  %188 = vmatprep.mubr.f32.mxu0 0.0
  %189 = vmatmul.mubr.f32.gmra.mxu0 %v55
  %v190 = vpop.f32.mrf.mxu0
  %v191 = vadd.f32 %v45, %v190
  %v192 = vpop.f32.mrf.mxu0
  %193 = vmatprep.mubr.f32.mxu0 0.0
  %194 = vmatmul.mubr.f32.gmra.mxu0 %v58
  %v195 = vpop.f32.mrf.mxu0
  %v196 = vadd.f32 %v45, %v195
  %v197 = vpop.f32.mrf.mxu0
  %198 = vmatprep.mubr.f32.mxu0 0.0
  %199 = vmatmul.mubr.f32.gmra.mxu0 %v61
  %v200 = vpop.f32.mrf.mxu0
  %v201 = vadd.f32 %v45, %v200
  %v202 = vpop.f32.mrf.mxu0
  %203 = vmatprep.mubr.f32.mxu0 0.0
  %204 = vmatmul.mubr.f32.gmra.mxu0 %v64
  %v205 = vpop.f32.mrf.mxu0
  %v206 = vadd.f32 %v45, %v205
  %v207 = vpop.f32.mrf.mxu0
  %208 = vmatprep.mubr.f32.mxu0 0.0
  %209 = vmatmul.mubr.f32.gmra.mxu0 %v67
  %v210 = vpop.f32.mrf.mxu0
  %v211 = vadd.f32 %v45, %v210
  %v212 = vpop.f32.mrf.mxu0
  %213 = vmatprep.mubr.f32.mxu0 0.0
  %214 = vmatmul.mubr.f32.gmra.mxu0 %v70
  %v215 = vpop.f32.mrf.mxu0
  %v216 = vadd.f32 %v45, %v215
  %v217 = vpop.f32.mrf.mxu0
  %218 = vmatprep.mubr.f32.mxu0 0.0
  %219 = vmatmul.mubr.f32.gmra.mxu0 %v73
  %v220 = vpop.f32.mrf.mxu0
  %v221 = vadd.f32 %v45, %v220
  %v222 = vpop.f32.mrf.mxu0
  %223 = vmatprep.mubr.f32.mxu0 0.0
  %224 = vmatmul.mubr.f32.gmra.mxu0 %v76
  %v225 = vpop.f32.mrf.mxu0
  %v226 = vadd.f32 %v45, %v225
  %v227 = vpop.f32.mrf.mxu0
  %228 = vmatprep.mubr.f32.mxu0 0.0
  %229 = vmatmul.mubr.f32.gmra.mxu0 %v79
  %v230 = vpop.f32.mrf.mxu0
  %v231 = vadd.f32 %v45, %v230
  %v232 = vpop.f32.mrf.mxu0
  %233 = vmatprep.mubr.f32.mxu0 0.0
  %234 = vmatmul.mubr.f32.gmra.mxu0 %v82
  %v235 = vpop.f32.mrf.mxu0
  %v236 = vadd.f32 %v45, %v235
  %v237 = vpop.f32.mrf.mxu0
  %238 = vmatprep.mubr.f32.mxu0 0.0
  %239 = vmatmul.mubr.f32.gmra.mxu0 %v85
  %v240 = vpop.f32.mrf.mxu0
  %v241 = vadd.f32 %v45, %v240
  %v242 = vpop.f32.mrf.mxu0
  %243 = vmatprep.mubr.f32.mxu0 0.0
  %244 = vmatmul.mubr.f32.gmra.mxu0 %v88
  %v245 = vpop.f32.mrf.mxu0
  %v246 = vadd.f32 %v45, %v245
  %v247 = vpop.f32.mrf.mxu0
  %248 = vmatprep.mubr.f32.mxu0 0.0
  %249 = vmatmul.mubr.f32.gmra.mxu0 %v91
  %v250 = vpop.f32.mrf.mxu0
  %v251 = vadd.f32 %v45, %v250
  %v252 = vpop.f32.mrf.mxu0
  %253 = vmatprep.mubr.f32.mxu0 0.0
  %254 = vmatmul.mubr.f32.gmra.mxu0 %v94
  %v255 = vpop.f32.mrf.mxu0
  %v256 = vadd.f32 %v45, %v255
  %v257 = vpop.f32.mrf.mxu0
  %258 = vmatprep.mubr.f32.mxu0 0.0
  %259 = vmatmul.mubr.f32.gmra.mxu0 %v97
  %v260 = vpop.f32.mrf.mxu0
  %v261 = vadd.f32 %v45, %v260
  %v262 = vpop.f32.mrf.mxu0
  %263 = vmatprep.mubr.f32.mxu0 0.0
  %264 = vmatmul.mubr.f32.gmra.mxu0 %v100
  %v265 = vpop.f32.mrf.mxu0
  %v266 = vadd.f32 %v45, %v265
  %v267 = vpop.f32.mrf.mxu0
  %268 = vmatprep.mubr.f32.mxu0 0.0
  %269 = vmatmul.mubr.f32.gmra.mxu0 %v103
  %v270 = vpop.f32.mrf.mxu0
  %v271 = vadd.f32 %v45, %v270
  %v272 = vpop.f32.mrf.mxu0
  %273 = vmatprep.mubr.f32.mxu0 0.0
  %274 = vmatmul.mubr.f32.gmra.mxu0 %v106
  %v275 = vpop.f32.mrf.mxu0
  %v276 = vadd.f32 %v45, %v275
  %v277 = vpop.f32.mrf.mxu0
  %278 = vmatprep.mubr.f32.mxu0 0.0
  %279 = vmatmul.mubr.f32.gmra.mxu0 %v109
  %v280 = vpop.f32.mrf.mxu0
  %v281 = vadd.f32 %v45, %v280
  %v282 = vpop.f32.mrf.mxu0
  %283 = vmatprep.mubr.f32.mxu0 0.0
  %284 = vmatmul.mubr.f32.gmra.mxu0 %v112
  %v285 = vpop.f32.mrf.mxu0
  %v286 = vadd.f32 %v45, %v285
  %v287 = vpop.f32.mrf.mxu0
  %288 = vdwg.mxu0
  %v289 = vpack.c.bf16 %v186, %v181
  %v290 = vpack.c.bf16 %v196, %v191
  %v291 = vpack.c.bf16 %v206, %v201
  %v292 = vpack.c.bf16 %v216, %v211
  %v293 = vpack.c.bf16 %v226, %v221
  %v294 = vpack.c.bf16 %v236, %v231
  %v295 = vpack.c.bf16 %v246, %v241
  %v296 = vpack.c.bf16 %v256, %v251
  %v297 = vpack.c.bf16 %v266, %v261
  %v298 = vpack.c.bf16 %v276, %v271
  %v299 = vpack.c.bf16 %v286, %v281
  %v311 = vunpack.c.l.b16 %v289
  %v312 = vunpack.c.h.b16 %v289
  %v313 = vunpack.c.l.b16 %v290
  %v314 = vunpack.c.h.b16 %v290
  %v315 = vunpack.c.l.b16 %v291
  %v316 = vunpack.c.h.b16 %v291
  %v317 = vunpack.c.l.b16 %v292
  %v318 = vunpack.c.h.b16 %v292
  %v319 = vunpack.c.l.b16 %v293
  %v320 = vunpack.c.h.b16 %v293
  %v321 = vunpack.c.l.b16 %v294
  %v322 = vunpack.c.h.b16 %v294
  %v323 = vunpack.c.l.b16 %v295
  %v324 = vunpack.c.h.b16 %v295
  %v325 = vunpack.c.l.b16 %v296
  %v326 = vunpack.c.h.b16 %v296
  %v327 = vunpack.c.l.b16 %v297
  %v328 = vunpack.c.h.b16 %v297
  %v329 = vunpack.c.l.b16 %v298
  %v330 = vunpack.c.h.b16 %v298
  %v331 = vunpack.c.l.b16 %v299
  %v332 = vunpack.c.h.b16 %v299
  %v333 = vpack.c.b16 %v311, %v311
  %v334 = vpack.c.b16 %v312, %v312
  %v335 = vpack.c.b16 %v313, %v313
  %v336 = vpack.c.b16 %v314, %v314
  %v337 = vpack.c.b16 %v315, %v315
  %v338 = vpack.c.b16 %v316, %v316
  %v339 = vpack.c.b16 %v317, %v317
  %v340 = vpack.c.b16 %v318, %v318
  %v341 = vpack.c.b16 %v319, %v319
  %v342 = vpack.c.b16 %v320, %v320
  %v343 = vpack.c.b16 %v321, %v321
  %v344 = vpack.c.b16 %v322, %v322
  %v345 = vpack.c.b16 %v323, %v323
  %v346 = vpack.c.b16 %v324, %v324
  %v347 = vpack.c.b16 %v325, %v325
  %v348 = vpack.c.b16 %v326, %v326
  %v349 = vpack.c.b16 %v327, %v327
  %v350 = vpack.c.b16 %v328, %v328
  %v351 = vpack.c.b16 %v329, %v329
  %v352 = vpack.c.b16 %v330, %v330
  %v353 = vpack.c.b16 %v331, %v331
  %v354 = vpack.c.b16 %v332, %v332
  %vm377 = vcmask 257024
  %378 = vst.msk [vmem:[%s3] sm:$0xf] %vm377, %v333
  %379 = vst.msk [vmem:[%s3 + $0x4] sm:$0xf] %vm377, %v334
  %380 = vst.msk [vmem:[%s3 + $0x8] sm:$0xf] %vm377, %v335
  %381 = vst.msk [vmem:[%s3 + $0xc] sm:$0xf] %vm377, %v336
  %382 = vst.msk [vmem:[%s3 + $0x10] sm:$0xf] %vm377, %v337
  %383 = vst.msk [vmem:[%s3 + $0x14] sm:$0xf] %vm377, %v338
  %384 = vst.msk [vmem:[%s3 + $0x18] sm:$0xf] %vm377, %v339
  %385 = vst.msk [vmem:[%s3 + $0x1c] sm:$0xf] %vm377, %v340
  %386 = vst.msk [vmem:[%s3 + $0x20] sm:$0xf] %vm377, %v341
  %387 = vst.msk [vmem:[%s3 + $0x24] sm:$0xf] %vm377, %v342
  %388 = vst.msk [vmem:[%s3 + $0x28] sm:$0xf] %vm377, %v343
  %389 = vst.msk [vmem:[%s3 + $0x2c] sm:$0xf] %vm377, %v344
  %390 = vst.msk [vmem:[%s3 + $0x30] sm:$0xf] %vm377, %v345
  %391 = vst.msk [vmem:[%s3 + $0x34] sm:$0xf] %vm377, %v346
  %392 = vst.msk [vmem:[%s3 + $0x38] sm:$0xf] %vm377, %v347
  %393 = vst.msk [vmem:[%s3 + $0x3c] sm:$0xf] %vm377, %v348
  %394 = vst.msk [vmem:[%s3 + $0x40] sm:$0xf] %vm377, %v349
  %395 = vst.msk [vmem:[%s3 + $0x44] sm:$0xf] %vm377, %v350
  %396 = vst.msk [vmem:[%s3 + $0x48] sm:$0xf] %vm377, %v351
  %397 = vst.msk [vmem:[%s3 + $0x4c] sm:$0xf] %vm377, %v352
  %398 = vst.msk [vmem:[%s3 + $0x50] sm:$0xf] %vm377, %v353
  %399 = vst.msk [vmem:[%s3 + $0x54] sm:$0xf] %vm377, %v354
  // Predicated region
  $region14: #{tpu_custom_call.1} parent=0 // pred_check
    _
  $region15: #{tpu_custom_call.1} parent=0 // pred_check_branch
    %401 = sbr.rel (0) target = $region17
  $region16: #{tpu_custom_call.1} parent=0 // pred_region
    _
  $region17: #{tpu_custom_call.1} parent=0 // pred_fallthru
    _
  // Predicated region
  $region18: #{tpu_custom_call.1} parent=0 // pred_check
    _
  $region19: #{tpu_custom_call.1} parent=0 // pred_check_branch
    %403 = sbr.rel (0) target = $region21
  $region20: #{tpu_custom_call.1} parent=0 // pred_region
    _
  $region21: #{tpu_custom_call.1} parent=0 // pred_fallthru
    _

</llo_original>
